<compile_context>
chip_gen: v7x
topology: tpu7x:2x2x1
jax: 0.10.0
libtpu: 0.0.40
codegen_flags: <defaults>
</compile_context>

<pallas_src>
import functools

import jax
import jax.numpy as jnp
from jax.experimental import pallas as pl
from jax.experimental.pallas import tpu as pltpu


def _largest_divisor_tile(n, target, step):
    """Largest multiple of `step` that divides `n` and is <= target, else None."""
    t = min(target, n)
    t -= t % step
    while t >= step:
        if n % t == 0:
            return t
        t -= step
    return None


def _layernorm(x_ref, g_ref, bta_ref, eps):
    x = x_ref[...].astype(jnp.float32)                       # (TM, D)
    mean = jnp.mean(x, axis=-1, keepdims=True)
    cent = x - mean
    var = jnp.mean(cent * cent, axis=-1, keepdims=True)
    xn = cent * jax.lax.rsqrt(var + eps)
    return xn * g_ref[...].astype(jnp.float32) + bta_ref[...].astype(jnp.float32)


def prenorm_ff_resident_kernel(x_ref, g_ref, bta_ref, w1_ref, b1_ref,
                               w2_ref, b2_ref, o_ref, *, eps):
    """grid=(row_tiles,).  bf16 W1/W2 have constant block indices -> DMA'd once."""
    xn = _layernorm(x_ref, g_ref, bta_ref, eps)               # (TM, D) f32
    h = jnp.dot(xn.astype(jnp.bfloat16), w1_ref[...],
                preferred_element_type=jnp.float32)           # (TM, H) f32
    # TODO(synk): PyTorch nn.GELU() defaults to the exact erf form; tanh-approx
    # GELU is used here (matches the provided reference, tiny numeric delta).
    h = jax.nn.gelu(h + b1_ref[...], approximate=True)
    y = jnp.dot(h.astype(jnp.bfloat16), w2_ref[...],
                preferred_element_type=jnp.float32)           # (TM, D) f32
    o_ref[...] = (y + b2_ref[...]).astype(o_ref.dtype)


def prenorm_ff_tiled_kernel(x_ref, g_ref, bta_ref, w1_ref, b1_ref,
                            w2_ref, b2_ref, o_ref, xn_ref, acc_ref, *, eps):
    """grid=(row_tiles, h_tiles).  Hidden dim is the reduction ('arbitrary') axis."""
    hk = pl.program_id(1)

    @pl.when(hk == 0)
    def _():
        # LayerNorm once per row tile, cached in bf16 (the MXU consumes bf16
        # anyway); accumulator initialised with b2 so there is no finalize add.
        xn_ref[...] = _layernorm(x_ref, g_ref, bta_ref, eps).astype(jnp.bfloat16)
        acc_ref[...] = jnp.broadcast_to(b2_ref[...], acc_ref.shape)

    h = jnp.dot(xn_ref[...], w1_ref[...], preferred_element_type=jnp.float32)
    h = jax.nn.gelu(h + b1_ref[...], approximate=True)
    acc_ref[...] += jnp.dot(h.astype(jnp.bfloat16), w2_ref[...],
                            preferred_element_type=jnp.float32)

    @pl.when(hk == pl.num_programs(1) - 1)
    def _():
        o_ref[...] = acc_ref[...].astype(o_ref.dtype)


def prenorm_feedforward(x, gamma, beta, w1, b1, w2, b2, *,
                        eps=1e-5, tm=None, th=512,
                        weight_budget_bytes=16 * 1024 * 1024):
    B, S, D = x.shape
    H = w1.shape[1]
    M = B * S
    xf = x.reshape(M, D)

    # PyTorch LayerNorm / Linear store 1-D params; the kernel wants (1, dim).
    gamma = jnp.asarray(gamma, jnp.float32).reshape(1, D)
    beta = jnp.asarray(beta, jnp.float32).reshape(1, D)
    b1 = jnp.asarray(b1, jnp.float32).reshape(1, H)
    b2 = jnp.asarray(b2, jnp.float32).reshape(1, D)
    # Weights cross the pallas_call boundary in bf16 (halves HBM traffic,
    # removes per-step f32->bf16 packs; f32 accumulation keeps accuracy).
    w1 = jnp.asarray(w1, jnp.bfloat16)
    w2 = jnp.asarray(w2, jnp.bfloat16)

    # ---- per-generation sizing ------------------------------------------
    try:  # v5e/v6e: 128 MiB VMEM per core, v7x: 64 MiB.
        vmem_cap = int(pltpu.get_tpu_info().vmem_capacity_bytes)
    except Exception:
        vmem_cap = 64 * 1024 * 1024            # conservative (v7x) fallback
    big_vmem = vmem_cap >= 96 * 1024 * 1024
    # <= ~56 MiB on v7x, 96 MiB on 128 MiB chips.
    vmem_limit = max(32 << 20, min(vmem_cap - (8 << 20), 96 << 20))

    weights_resident = 2 * (D * H) * 2 <= weight_budget_bytes   # bf16 bytes

    if tm is None:
        # Resident weights: tm=512 is already past the compute-bound roofline
        # knee on v5e/v6e/v7x and keeps x/out tiles + the (tm,H) f32 GELU
        # intermediate + double-buffered bf16 weights well inside v7x's 64 MiB.
        # H-tiled fallback streams weights once per row tile, so bigger row
        # tiles raise arithmetic intensity -> tm=1024 on 128 MiB chips.
        tm = 512 if (weights_resident or not big_vmem) else 1024
    if M <= tm:
        tm = M                                 # full extent (always legal)
    else:
        tm = max(8, (tm // 8) * 8)             # sublane-aligned; ragged tail OK
    grid_m = pl.cdiv(M, tm)

    itemsize = x.dtype.itemsize
    weight_bytes = (w1.size + w2.size) * 2     # bf16
    cost = pl.CostEstimate(
        flops=4 * M * D * H,                   # two (M,D,H)-sized matmuls
        transcendentals=M * H,                 # GELU tanh
        bytes_accessed=(M * D * itemsize * 2                         # x + out
                        + weight_bytes * (1 if weights_resident else grid_m)
                        + (gamma.size + beta.size + b1.size + b2.size) * 4),
    )

    if weights_resident:
        # Constant block indices: each parameter is DMA'd into VMEM once for
        # the whole kernel (the pipeline skips copies whose block index does
        # not change).  On v7x, if a larger tm squeezes VMEM, these constant
        # specs can additionally take pipeline_mode=pl.Buffered(1) to reclaim
        # the dead second buffer.
        grid_spec = pltpu.PrefetchScalarGridSpec(
            num_scalar_prefetch=0,
            grid=(grid_m,),
            in_specs=[
                pl.BlockSpec((tm, D), lambda i: (i, 0)),    # x rows
                pl.BlockSpec((1, D), lambda i: (0, 0)),     # gamma
                pl.BlockSpec((1, D), lambda i: (0, 0)),     # beta
                pl.BlockSpec((D, H), lambda i: (0, 0)),     # W1 (bf16, resident)
                pl.BlockSpec((1, H), lambda i: (0, 0)),     # b1
                pl.BlockSpec((H, D), lambda i: (0, 0)),     # W2 (bf16, resident)
                pl.BlockSpec((1, D), lambda i: (0, 0)),     # b2
            ],
            out_specs=pl.BlockSpec((tm, D), lambda i: (i, 0)),   # lane-dense
        )
        kernel = functools.partial(prenorm_ff_resident_kernel, eps=eps)
        dims = ("parallel",)
    else:
        # Largest 128-multiple divisor of H (8-multiple fallback) so the
        # reduction tile always divides H exactly: no ragged K block polluting
        # the accumulator, no silent th=H VMEM cliff on v7x.
        th = (_largest_divisor_tile(H, th, 128)
              or _largest_divisor_tile(H, th, 8) or H)
        grid_spec = pltpu.PrefetchScalarGridSpec(
            num_scalar_prefetch=0,
            grid=(grid_m, H // th),
            in_specs=[
                pl.BlockSpec((tm, D), lambda i, k: (i, 0)),   # x rows
                pl.BlockSpec((1, D), lambda i, k: (0, 0)),    # gamma
                pl.BlockSpec((1, D), lambda i, k: (0, 0)),    # beta
                pl.BlockSpec((D, th), lambda i, k: (0, k)),   # W1 column slab (bf16)
                pl.BlockSpec((1, th), lambda i, k: (0, k)),   # b1 slice
                pl.BlockSpec((th, D), lambda i, k: (k, 0)),   # W2 row slab (bf16)
                pl.BlockSpec((1, D), lambda i, k: (0, 0)),    # b2
            ],
            out_specs=pl.BlockSpec((tm, D), lambda i, k: (i, 0)),
            scratch_shapes=[
                pltpu.VMEM((tm, D), jnp.bfloat16),   # cached LN(x), bf16
                pltpu.VMEM((tm, D), jnp.float32),    # accumulator (init = b2)
            ],
        )
        kernel = functools.partial(prenorm_ff_tiled_kernel, eps=eps)
        dims = ("parallel", "arbitrary")

    out = pl.pallas_call(
        kernel,
        out_shape=jax.ShapeDtypeStruct((M, D), x.dtype),
        grid_spec=grid_spec,
        compiler_params=pltpu.CompilerParams(
            dimension_semantics=dims,
            vmem_limit_bytes=vmem_limit,
        ),
        cost_estimate=cost,
    )(xf, gamma, beta, w1, b1, w2, b2)

    return out.reshape(B, S, D)


def prenorm_feedforward_ref(x, gamma, beta, w1, b1, w2, b2, eps=1e-5):
    """Pure-JAX reference mirroring the kernel math (bf16 matmuls, f32 acc)."""
    xf = x.astype(jnp.float32)
    mean = xf.mean(-1, keepdims=True)
    var = ((xf - mean) ** 2).mean(-1, keepdims=True)
    xn = (xf - mean) * jax.lax.rsqrt(var + eps) * gamma + beta
    h = jnp.dot(xn.astype(jnp.bfloat16), w1.astype(jnp.bfloat16),
                preferred_element_type=jnp.float32) + b1
    h = jax.nn.gelu(h, approximate=True)
    y = jnp.dot(h.astype(jnp.bfloat16), w2.astype(jnp.bfloat16),
                preferred_element_type=jnp.float32) + b2
    return y.astype(x.dtype)


if __name__ == "__main__":
    key = jax.random.PRNGKey(0)
    k_x, k_w1, k_b1, k_w2, k_b2, k_g, k_bt = jax.random.split(key, 7)

    # TODO(synk): PreNorm wraps an arbitrary `fn`; here it is instantiated as
    # the transUNet FeedForward (deterministic, tanh-GELU).
    B, S, D, H = 2, 8, 32, 64
    x = jax.random.normal(k_x, (B, S, D), dtype=jnp.float32)
    gamma = 1.0 + 0.05 * jax.random.normal(k_g, (D,), dtype=jnp.float32)   # PyTorch-style (D,)
    beta = 0.01 * jax.random.normal(k_bt, (D,), dtype=jnp.float32)
    w1 = jax.random.normal(k_w1, (D, H), dtype=jnp.float32) * 0.1
    b1 = jax.random.normal(k_b1, (H,), dtype=jnp.float32) * 0.01
    w2 = jax.random.normal(k_w2, (H, D), dtype=jnp.float32) * 0.1
    b2 = jax.random.normal(k_b2, (D,), dtype=jnp.float32) * 0.01

    out = prenorm_feedforward(x, gamma, beta, w1, b1, w2, b2)
    out = jax.block_until_ready(out)

    ref = prenorm_feedforward_ref(x, gamma, beta, w1, b1, w2, b2)
    assert out.shape == x.shape and out.dtype == x.dtype
    assert jnp.allclose(out, ref, atol=5e-3, rtol=5e-3)

    print("KERNEL_OK")
</pallas_src>

<mosaic_0001>
module attributes {stable_mosaic.version = 11 : i64} {
  func.func @prenorm_ff_resident_kernel(%arg0: i32, %arg1: memref<16x32xf32, #tpu.memory_space<vmem>>, %arg2: memref<1x32xf32, #tpu.memory_space<vmem>>, %arg3: memref<1x32xf32, #tpu.memory_space<vmem>>, %arg4: memref<32x64xbf16, #tpu.memory_space<vmem>>, %arg5: memref<1x64xf32, #tpu.memory_space<vmem>>, %arg6: memref<64x32xbf16, #tpu.memory_space<vmem>>, %arg7: memref<1x32xf32, #tpu.memory_space<vmem>>, %arg8: memref<16x32xf32, #tpu.memory_space<vmem>>) attributes {dimension_semantics = [#tpu.dimension_semantics<parallel>], iteration_bounds = array<i64: 1>, scalar_prefetch = 0 : i64, scratch_operands = 0 : i64, tpu.core_type = #tpu.core_type<tc>, window_params = [{transform_indices = @transform_0, window_bounds = array<i64: 16, 32>}, {pipeline_mode = #tpu.pipeline_mode<synchronous>, transform_indices = @transform_1, window_bounds = array<i64: 1, 32>}, {pipeline_mode = #tpu.pipeline_mode<synchronous>, transform_indices = @transform_2, window_bounds = array<i64: 1, 32>}, {pipeline_mode = #tpu.pipeline_mode<synchronous>, transform_indices = @transform_3, window_bounds = array<i64: 32, 64>}, {pipeline_mode = #tpu.pipeline_mode<synchronous>, transform_indices = @transform_4, window_bounds = array<i64: 1, 64>}, {pipeline_mode = #tpu.pipeline_mode<synchronous>, transform_indices = @transform_5, window_bounds = array<i64: 64, 32>}, {pipeline_mode = #tpu.pipeline_mode<synchronous>, transform_indices = @transform_6, window_bounds = array<i64: 1, 32>}, {transform_indices = @transform_7, window_bounds = array<i64: 16, 32>}]} {
    %c0 = arith.constant 0 : index
    %c0_0 = arith.constant 0 : index
    %0 = vector.load %arg1[%c0, %c0_0] : memref<16x32xf32, #tpu.memory_space<vmem>>, vector<16x32xf32>
    %cst = arith.constant dense<0.000000e+00> : vector<16xf32>
    %1 = vector.multi_reduction <add>, %0, %cst [1] : vector<16x32xf32> to vector<16xf32>
    %2 = vector.shape_cast %1 : vector<16xf32> to vector<16x1xf32>
    %cst_1 = arith.constant 3.200000e+01 : f32
    %3 = vector.broadcast %cst_1 : f32 to vector<16x1xf32>
    %4 = arith.divf %2, %3 : vector<16x1xf32>
    %5 = vector.broadcast %4 : vector<16x1xf32> to vector<16x32xf32>
    %6 = arith.subf %0, %5 : vector<16x32xf32>
    %7 = arith.mulf %6, %6 : vector<16x32xf32>
    %cst_2 = arith.constant dense<0.000000e+00> : vector<16xf32>
    %8 = vector.multi_reduction <add>, %7, %cst_2 [1] : vector<16x32xf32> to vector<16xf32>
    %9 = vector.shape_cast %8 : vector<16xf32> to vector<16x1xf32>
    %cst_3 = arith.constant 3.200000e+01 : f32
    %10 = vector.broadcast %cst_3 : f32 to vector<16x1xf32>
    %11 = arith.divf %9, %10 : vector<16x1xf32>
    %cst_4 = arith.constant 9.99999974E-6 : f32
    %12 = vector.broadcast %cst_4 : f32 to vector<16x1xf32>
    %13 = arith.addf %11, %12 : vector<16x1xf32>
    %14 = math.rsqrt %13 : vector<16x1xf32>
    %15 = vector.broadcast %14 : vector<16x1xf32> to vector<16x32xf32>
    %16 = arith.mulf %6, %15 : vector<16x32xf32>
    %c0_5 = arith.constant 0 : index
    %c0_6 = arith.constant 0 : index
    %17 = vector.load %arg2[%c0_5, %c0_6] : memref<1x32xf32, #tpu.memory_space<vmem>>, vector<1x32xf32>
    %18 = vector.broadcast %17 : vector<1x32xf32> to vector<16x32xf32>
    %19 = arith.mulf %16, %18 : vector<16x32xf32>
    %c0_7 = arith.constant 0 : index
    %c0_8 = arith.constant 0 : index
    %20 = vector.load %arg3[%c0_7, %c0_8] : memref<1x32xf32, #tpu.memory_space<vmem>>, vector<1x32xf32>
    %21 = vector.broadcast %20 : vector<1x32xf32> to vector<16x32xf32>
    %22 = arith.addf %19, %21 : vector<16x32xf32>
    %23 = arith.truncf %22 : vector<16x32xf32> to vector<16x32xbf16>
    %c0_9 = arith.constant 0 : index
    %c0_10 = arith.constant 0 : index
    %24 = vector.load %arg4[%c0_9, %c0_10] : memref<32x64xbf16, #tpu.memory_space<vmem>>, vector<32x64xbf16>
    %cst_11 = arith.constant dense<0.000000e+00> : vector<16x64xf32>
    %25 = tpu.matmul %23, %24, %cst_11 {dimension_numbers = #tpu.dot_dimension_numbers<[1], [0], [0], [1], [0, 0, 1, 1], [], []>} : vector<16x32xbf16>, vector<32x64xbf16>, vector<16x64xf32> -> vector<16x64xf32>
    %c0_12 = arith.constant 0 : index
    %c0_13 = arith.constant 0 : index
    %26 = vector.load %arg5[%c0_12, %c0_13] : memref<1x64xf32, #tpu.memory_space<vmem>>, vector<1x64xf32>
    %27 = vector.broadcast %26 : vector<1x64xf32> to vector<16x64xf32>
    %28 = arith.addf %25, %27 : vector<16x64xf32>
    %29 = arith.mulf %28, %28 : vector<16x64xf32>
    %30 = arith.mulf %28, %29 : vector<16x64xf32>
    %cst_14 = arith.constant 4.471500e-02 : f32
    %31 = vector.broadcast %cst_14 : f32 to vector<16x64xf32>
    %32 = arith.mulf %31, %30 : vector<16x64xf32>
    %33 = arith.addf %28, %32 : vector<16x64xf32>
    %cst_15 = arith.constant 0.797884583 : f32
    %34 = vector.broadcast %cst_15 : f32 to vector<16x64xf32>
    %35 = arith.mulf %34, %33 : vector<16x64xf32>
    %36 = math.tanh %35 : vector<16x64xf32>
    %cst_16 = arith.constant 1.000000e+00 : f32
    %37 = vector.broadcast %cst_16 : f32 to vector<16x64xf32>
    %38 = arith.addf %37, %36 : vector<16x64xf32>
    %cst_17 = arith.constant 5.000000e-01 : f32
    %39 = vector.broadcast %cst_17 : f32 to vector<16x64xf32>
    %40 = arith.mulf %39, %38 : vector<16x64xf32>
    %41 = arith.mulf %28, %40 : vector<16x64xf32>
    %42 = arith.truncf %41 : vector<16x64xf32> to vector<16x64xbf16>
    %c0_18 = arith.constant 0 : index
    %c0_19 = arith.constant 0 : index
    %43 = vector.load %arg6[%c0_18, %c0_19] : memref<64x32xbf16, #tpu.memory_space<vmem>>, vector<64x32xbf16>
    %cst_20 = arith.constant dense<0.000000e+00> : vector<16x32xf32>
    %44 = tpu.matmul %42, %43, %cst_20 {dimension_numbers = #tpu.dot_dimension_numbers<[1], [0], [0], [1], [0, 0, 1, 1], [], []>} : vector<16x64xbf16>, vector<64x32xbf16>, vector<16x32xf32> -> vector<16x32xf32>
    %c0_21 = arith.constant 0 : index
    %c0_22 = arith.constant 0 : index
    %45 = vector.load %arg7[%c0_21, %c0_22] : memref<1x32xf32, #tpu.memory_space<vmem>>, vector<1x32xf32>
    %46 = vector.broadcast %45 : vector<1x32xf32> to vector<16x32xf32>
    %47 = arith.addf %44, %46 : vector<16x32xf32>
    %c0_23 = arith.constant 0 : index
    %c0_24 = arith.constant 0 : index
    %48 = vector.load %arg8[%c0_23, %c0_24] : memref<16x32xf32, #tpu.memory_space<vmem>>, vector<16x32xf32>
    tpu.vector_store %arg8[%c0_23, %c0_24], %47 {strides = array<i32>} : memref<16x32xf32, #tpu.memory_space<vmem>>, vector<16x32xf32>,
    return
  }
  func.func @transform_0(%arg0: i32) -> (i32, i32) {
    %c0_i32 = arith.constant 0 : i32
    %c0_i32_0 = arith.constant 0 : i32
    return %arg0, %c0_i32 : i32, i32
  }
  func.func @transform_1(%arg0: i32) -> (i32, i32) {
    %c0_i32 = arith.constant 0 : i32
    %c0_i32_0 = arith.constant 0 : i32
    %c0_i32_1 = arith.constant 0 : i32
    return %c0_i32, %c0_i32_0 : i32, i32
  }
  func.func @transform_2(%arg0: i32) -> (i32, i32) {
    %c0_i32 = arith.constant 0 : i32
    %c0_i32_0 = arith.constant 0 : i32
    %c0_i32_1 = arith.constant 0 : i32
    return %c0_i32, %c0_i32_0 : i32, i32
  }
  func.func @transform_3(%arg0: i32) -> (i32, i32) {
    %c0_i32 = arith.constant 0 : i32
    %c0_i32_0 = arith.constant 0 : i32
    %c0_i32_1 = arith.constant 0 : i32
    return %c0_i32, %c0_i32_0 : i32, i32
  }
  func.func @transform_4(%arg0: i32) -> (i32, i32) {
    %c0_i32 = arith.constant 0 : i32
    %c0_i32_0 = arith.constant 0 : i32
    %c0_i32_1 = arith.constant 0 : i32
    return %c0_i32, %c0_i32_0 : i32, i32
  }
  func.func @transform_5(%arg0: i32) -> (i32, i32) {
    %c0_i32 = arith.constant 0 : i32
    %c0_i32_0 = arith.constant 0 : i32
    %c0_i32_1 = arith.constant 0 : i32
    return %c0_i32, %c0_i32_0 : i32, i32
  }
  func.func @transform_6(%arg0: i32) -> (i32, i32) {
    %c0_i32 = arith.constant 0 : i32
    %c0_i32_0 = arith.constant 0 : i32
    %c0_i32_1 = arith.constant 0 : i32
    return %c0_i32, %c0_i32_0 : i32, i32
  }
  func.func @transform_7(%arg0: i32) -> (i32, i32) {
    %c0_i32 = arith.constant 0 : i32
    %c0_i32_0 = arith.constant 0 : i32
    return %arg0, %c0_i32 : i32, i32
  }
}

</mosaic_0001>

<llo_original>
// kernel: tpu_custom_call.1
$region0: #{tpu_custom_call.1}
  #allocation0 [shape = 'u32[]', space=smem, size = 0x4, offset = 0x4, fixed_abs, tag = 'smem constant byte address 0x4 - core index']
  #allocation1 [shape = 'u32[144,128]{1,0:T(1,128)}', space=vmem, size = 0x12000, scoped, tag = 'internal scratch']
  %s0 = inlined_call_operand.vmem [shape: f32[16,32], index: 0, kind: input, shape index: {}]
  %s1 = inlined_call_operand.vmem [shape: f32[1,32], index: 1, kind: input, shape index: {}]
  %s2 = inlined_call_operand.vmem [shape: f32[1,32], index: 2, kind: input, shape index: {}]
  %s3 = inlined_call_operand.vmem [shape: bf16[32,64], index: 3, kind: input, shape index: {}]
  %s4 = inlined_call_operand.vmem [shape: f32[1,64], index: 4, kind: input, shape index: {}]
  %s5 = inlined_call_operand.vmem [shape: bf16[64,32], index: 5, kind: input, shape index: {}]
  %s6 = inlined_call_operand.vmem [shape: f32[1,32], index: 6, kind: input, shape index: {}]
  %s7 = inlined_call_operand.hbm [shape: f32[16,32], index: 7, kind: output, shape index: {}]
  %s8 = sld [smem:[#allocation0]]
  $region38: #{tpu_custom_call.1} parent=0
    _
  %s10 = ssub.s32 1, %s8
  %s11 = scalar_select 0, %s10, %s8
  $region1: #{tpu_custom_call.1} parent=0
    #allocation2 [shape = 'u8[8192]{0}', space=vmem, size = 0x2000, scoped, tag = 'output window, operand 0, single buffered']
    #allocation3 [shape = 's32[1]{0}', space=sflag, size = 0x4, scoped, tag = 'scoped memory for tpu_custom_call.1']
    %12 = vsyncpa [#allocation3], 0
    // Predicated region
    $region2: #{tpu_custom_call.1} parent=1 // pred_check
      _
    $region3: #{tpu_custom_call.1} parent=1 // pred_check_branch
      %14 = sbr.rel (0) target = $region5
    $region4: #{tpu_custom_call.1} parent=1 // pred_region
      _
    $region5: #{tpu_custom_call.1} parent=1 // pred_fallthru
      _
    // Predicated region
    $region6: #{tpu_custom_call.1} parent=1 // pred_check
      _
    $region7: #{tpu_custom_call.1} parent=1 // pred_check_branch
      %16 = sbr.rel (0) target = $region9
    $region8: #{tpu_custom_call.1} parent=1 // pred_region
      _
    $region9: #{tpu_custom_call.1} parent=1 // pred_fallthru
      _
    // Predicated region
    $region10: #{tpu_custom_call.1} parent=1 // pred_check
      _
    $region11: #{tpu_custom_call.1} parent=1 // pred_check_branch
      %18 = sbr.rel (0) target = $region13
    $region12: #{tpu_custom_call.1} parent=1 // pred_region
      _
    $region13: #{tpu_custom_call.1} parent=1 // pred_fallthru
      _
    // Predicated region
    $region14: #{tpu_custom_call.1} parent=1 // pred_check
      _
    $region15: #{tpu_custom_call.1} parent=1 // pred_check_branch
      %20 = sbr.rel (0) target = $region17
    $region16: #{tpu_custom_call.1} parent=1 // pred_region
      _
    $region17: #{tpu_custom_call.1} parent=1 // pred_fallthru
      _
    // Predicated region
    $region18: #{tpu_custom_call.1} parent=1 // pred_check
      _
    $region19: #{tpu_custom_call.1} parent=1 // pred_check_branch
      %22 = sbr.rel (0) target = $region21
    $region20: #{tpu_custom_call.1} parent=1 // pred_region
      _
    $region21: #{tpu_custom_call.1} parent=1 // pred_fallthru
      _
    // Predicated region
    $region22: #{tpu_custom_call.1} parent=1 // pred_check
      _
    $region23: #{tpu_custom_call.1} parent=1 // pred_check_branch
      %24 = sbr.rel (0) target = $region25
    $region24: #{tpu_custom_call.1} parent=1 // pred_region
      _
    $region25: #{tpu_custom_call.1} parent=1 // pred_fallthru
      _
    // Predicated region
    $region26: #{tpu_custom_call.1} parent=1 // pred_check
      _
    $region27: #{tpu_custom_call.1} parent=1 // pred_check_branch
      %26 = sbr.rel (0) target = $region29
    $region28: #{tpu_custom_call.1} parent=1 // pred_region
      _
    $region29: #{tpu_custom_call.1} parent=1 // pred_fallthru
      _
    %v28 = vld [vmem:[%s0] sm:$0xff]
    %v29 = vld [vmem:[%s0 + $0x8] sm:$0xff]
    %vm30 = vcmask 261120
    %v31 = vsel %vm30, %v28, 0.0
    %32 = vadd.xlane.f32.xlu0 %v31
    %v33 = vpop.xlane.xlu0 %32
    %v34 = vsel %vm30, %v29, 0.0
    %35 = vadd.xlane.f32.xlu0 %v34
    %v36 = vpop.xlane.xlu0 %35
    %v37 = vrcp.pop 32.0
    %v38 = vmul.f32 %v33, %v37
    %v39 = vmul.f32 %v36, %v37
    %v40 = vsub.f32 %v28, %v38
    %v41 = vsub.f32 %v29, %v39
    %v42 = vmul.f32 %v40, %v40
    %v43 = vmul.f32 %v41, %v41
    %v44 = vsel %vm30, %v42, 0.0
    %45 = vadd.xlane.f32.xlu0 %v44
    %v46 = vpop.xlane.xlu0 %45
    %v47 = vsel %vm30, %v43, 0.0
    %48 = vadd.xlane.f32.xlu0 %v47
    %v49 = vpop.xlane.xlu0 %48
    %v50 = vmul.f32 %v46, %v37
    %v51 = vmul.f32 %v49, %v37
    %v52 = vadd.f32 %v50, 1e-05
    %v53 = vadd.f32 %v51, 1e-05
    %v54 = vrsqrt.pop %v52
    %v55 = vrsqrt.pop %v53
    %v56 = vmul.f32 %v40, %v54
    %v57 = vmul.f32 %v41, %v55
    %v58 = vld [vmem:[%s1] sm:$0x1]
    %v60 = vlaneseq
    %v61 = vshrl.u32 %v60, 7
    %v62 = vsub.s32 0, %v61
    %v63 = vrot.slane %v58, %v62
    %v65 = vmul.f32 %v56, %v63
    %v66 = vmul.f32 %v57, %v63
    %v67 = vld [vmem:[%s2] sm:$0x1]
    %v69 = vlaneseq
    %v70 = vshrl.u32 %v69, 7
    %v71 = vsub.s32 0, %v70
    %v72 = vrot.slane %v67, %v71
    %v74 = vadd.f32 %v65, %v72
    %v75 = vadd.f32 %v66, %v72
    %v76 = vpack.c.bf16 %v75, %v74
    %v77 = vld [vmem:[%s3] sm:$0xf]
    %v78 = vld [vmem:[%s3 + $0x4] sm:$0xf]
    %v79 = vld [vmem:[%s3 + $0x8] sm:$0xf]
    %v80 = vld [vmem:[%s3 + $0xc] sm:$0xf]
    %v81 = vld [vmem:[%s4] sm:$0x1]
    %v83 = vlaneseq
    %v84 = vshrl.u32 %v83, 7
    %v85 = vsub.s32 0, %v84
    %v86 = vrot.slane %v81, %v85
    %v92 = vunpack.c.l.b16 %v77
    %v93 = vunpack.c.l.b16 %v78
    %v94 = vunpack.c.l.b16 %v79
    %v95 = vunpack.c.l.b16 %v80
    %v96 = vpack.c.b16 %v93, %v92
    %v97 = vpack.c.b16 %v95, %v94
    %v101 = vsel %vm30, %v76, 0
    %103 = vmatprep.subr.bf16.mxu0 0
    %104 = vmatpush1.bf16.msra.mxu0 %v96
    %105 = vmatprep.subr.bf16.mxu0 0
    %106 = vmatpush1.bf16.msra.mxu0 %v97
    %107 = vmatprep.subr.bf16.mxu0 0
    %108 = vmatpush1.bf16.msra.mxu0 0
    %109 = vmatprep.subr.bf16.mxu0 0
    %110 = vmatpush1.bf16.msra.mxu0 0
    %111 = vmatprep.subr.bf16.mxu0 0
    %112 = vmatpush1.bf16.msra.mxu0 0
    %113 = vmatprep.subr.bf16.mxu0 0
    %114 = vmatpush1.bf16.msra.mxu0 0
    %115 = vmatprep.subr.bf16.mxu0 0
    %116 = vmatpush1.bf16.msra.mxu0 0
    %117 = vmatprep.subr.bf16.mxu0 0
    %118 = vmatpush1.bf16.msra.mxu0 0
    %119 = vmatprep.subr.bf16.mxu0 0
    %120 = vmatpush1.bf16.msra.mxu0 0
    %121 = vmatprep.subr.bf16.mxu0 0
    %122 = vmatpush1.bf16.msra.mxu0 0
    %123 = vmatprep.subr.bf16.mxu0 0
    %124 = vmatpush1.bf16.msra.mxu0 0
    %125 = vmatprep.subr.bf16.mxu0 0
    %126 = vmatpush1.bf16.msra.mxu0 0
    %127 = vmatprep.subr.bf16.mxu0 0
    %128 = vmatpush1.bf16.msra.mxu0 0
    %129 = vmatprep.subr.bf16.mxu0 0
    %130 = vmatpush1.bf16.msra.mxu0 0
    %131 = vmatprep.subr.bf16.mxu0 0
    %132 = vmatpush1.bf16.msra.mxu0 0
    %133 = vmatprep.subr.bf16.mxu0 0
    %134 = vmatpush1.bf16.msra.mxu0 0
    %135 = vmatprep.mubr.bf16.mxu0 0
    %136 = vmatmul.mubr.bf16.gmra.mrb[0].mxu0 %v101
    %v137 = vpop.f32.mrb[0].mxu0
    %v138 = vadd.f32 %v86, %v137
    %v139 = vpop.f32.mrb[0].mxu0
    %v140 = vpop.f32.mrb[0].mxu0
    %v141 = vadd.f32 %v86, %v140
    %v142 = vpop.f32.mrb[0].mxu0
    %143 = vdwg.mxu0
    %v144 = vmul.f32 %v138, %v138
    %v145 = vmul.f32 %v141, %v141
    %v146 = vmul.f32 %v138, %v144
    %v147 = vmul.f32 %v141, %v145
    %v148 = vmul.f32 %v146, 0.044715
    %v149 = vmul.f32 %v147, 0.044715
    %v150 = vadd.f32 %v138, %v148
    %v151 = vadd.f32 %v141, %v149
    %v152 = vmul.f32 %v150, 0.7978846
    %v153 = vmul.f32 %v151, 0.7978846
    %v154 = vtanh.pop %v152
    %v155 = vtanh.pop %v153
    %v156 = vadd.f32 %v154, 1.0
    %v157 = vadd.f32 %v155, 1.0
    %v158 = vmul.f32 %v156, 0.5
    %v159 = vmul.f32 %v157, 0.5
    %v160 = vmul.f32 %v138, %v158
    %v161 = vmul.f32 %v141, %v159
    %v162 = vpack.c.bf16 %v161, %v160
    %v163 = vld [vmem:[%s5] sm:$0xf]
    %v164 = vld [vmem:[%s5 + $0x4] sm:$0xf]
    %v165 = vld [vmem:[%s5 + $0x8] sm:$0xf]
    %v166 = vld [vmem:[%s5 + $0xc] sm:$0xf]
    %v167 = vld [vmem:[%s5 + $0x10] sm:$0xf]
    %v168 = vld [vmem:[%s5 + $0x14] sm:$0xf]
    %v169 = vld [vmem:[%s5 + $0x18] sm:$0xf]
    %v170 = vld [vmem:[%s5 + $0x1c] sm:$0xf]
    %v171 = vld [vmem:[%s6] sm:$0x1]
    %v173 = vlaneseq
    %v174 = vshrl.u32 %v173, 7
    %v175 = vsub.s32 0, %v174
    %v176 = vrot.slane %v171, %v175
    %v186 = vunpack.c.l.b16 %v163
    %v187 = vunpack.c.l.b16 %v164
    %v188 = vunpack.c.l.b16 %v165
    %v189 = vunpack.c.l.b16 %v166
    %v190 = vunpack.c.l.b16 %v167
    %v191 = vunpack.c.l.b16 %v168
    %v192 = vunpack.c.l.b16 %v169
    %v193 = vunpack.c.l.b16 %v170
    %v194 = vpack.c.b16 %v187, %v186
    %v195 = vpack.c.b16 %v189, %v188
    %v196 = vpack.c.b16 %v191, %v190
    %v197 = vpack.c.b16 %v193, %v192
    %vm202 = vcmask 523264
    %v204 = vsel %vm202, %v162, 0
    %206 = vmatprep.subr.bf16.mxu0 0
    %207 = vmatpush1.bf16.msra.mxu0 %v194
    %208 = vmatprep.subr.bf16.mxu0 0
    %209 = vmatpush1.bf16.msra.mxu0 %v195
    %210 = vmatprep.subr.bf16.mxu0 0
    %211 = vmatpush1.bf16.msra.mxu0 %v196
    %212 = vmatprep.subr.bf16.mxu0 0
    %213 = vmatpush1.bf16.msra.mxu0 %v197
    %214 = vmatprep.subr.bf16.mxu0 0
    %215 = vmatpush1.bf16.msra.mxu0 0
    %216 = vmatprep.subr.bf16.mxu0 0
    %217 = vmatpush1.bf16.msra.mxu0 0
    %218 = vmatprep.subr.bf16.mxu0 0
    %219 = vmatpush1.bf16.msra.mxu0 0
    %220 = vmatprep.subr.bf16.mxu0 0
    %221 = vmatpush1.bf16.msra.mxu0 0
    %222 = vmatprep.subr.bf16.mxu0 0
    %223 = vmatpush1.bf16.msra.mxu0 0
    %224 = vmatprep.subr.bf16.mxu0 0
    %225 = vmatpush1.bf16.msra.mxu0 0
    %226 = vmatprep.subr.bf16.mxu0 0
    %227 = vmatpush1.bf16.msra.mxu0 0
    %228 = vmatprep.subr.bf16.mxu0 0
    %229 = vmatpush1.bf16.msra.mxu0 0
    %230 = vmatprep.subr.bf16.mxu0 0
    %231 = vmatpush1.bf16.msra.mxu0 0
    %232 = vmatprep.subr.bf16.mxu0 0
    %233 = vmatpush1.bf16.msra.mxu0 0
    %234 = vmatprep.subr.bf16.mxu0 0
    %235 = vmatpush1.bf16.msra.mxu0 0
    %236 = vmatprep.subr.bf16.mxu0 0
    %237 = vmatpush1.bf16.msra.mxu0 0
    %238 = vmatprep.mubr.bf16.mxu0 0
    %239 = vmatmul.mubr.bf16.gmra.mrb[0].mxu0 %v204
    %v240 = vpop.f32.mrb[0].mxu0
    %v241 = vadd.f32 %v176, %v240
    %v242 = vpop.f32.mrb[0].mxu0
    %v243 = vpop.f32.mrb[0].mxu0
    %v244 = vadd.f32 %v176, %v243
    %v245 = vpop.f32.mrb[0].mxu0
    %246 = vdwg.mxu0
    %247 = vst.msk [vmem:[#allocation2] sm:$0xff] %vm30, %v241
    %248 = vst.msk [vmem:[#allocation2 + $0x8] sm:$0xff] %vm30, %v244
    // Predicated region
    $region30: #{tpu_custom_call.1} parent=1 // pred_check
      _
    $region31: #{tpu_custom_call.1} parent=1 // pred_check_branch
      %250 = sbr.rel (0) target = $region33
    $region32: #{tpu_custom_call.1} parent=1 // pred_region
      %s252 = ssub.s32 256, 256
      %253 = vsyncadd [#allocation3], %s252
      %s254 = sshll.u32 [#allocation2], 4
      %s255 = int_to_ptr.vmem [resolvable:$true] %s254
      %260 = dma.vmem_to_hbm [thread:$0]  %s255, 256, %s7, [#allocation3], 128, 128, 8
    $region33: #{tpu_custom_call.1} parent=1 // pred_fallthru
      _
    // Predicated region
    $region34: #{tpu_custom_call.1} parent=1 // pred_check
      _
    $region35: #{tpu_custom_call.1} parent=1 // pred_check_branch
      %262 = sbr.rel (0) target = $region37
    $region36: #{tpu_custom_call.1} parent=1 // pred_region
      %263 = dma.done [#allocation3], 256
    $region37: #{tpu_custom_call.1} parent=1 // pred_fallthru
      _
    %264 = vsyncpa [#allocation3], 1

</llo_original>
